<compile_context>
chip_gen: v7x
topology: tpu7x:2x2x1
jax: 0.10.0
libtpu: 0.0.40
codegen_flags: <defaults>
</compile_context>

<pallas_src>
from functools import partial

import jax
import jax.numpy as jnp
from jax import lax
from jax.experimental import pallas as pl
from jax.experimental.pallas import tpu as pltpu


LANES = 128                 # last-dim width of the 2D view (one full vreg lane row)
CHUNK_R = 64                # strip-mine granularity: (64, 128) f32 = 8 vregs / array
MAX_TILE_R = 8192           # (8192, 128) f32 = 4 MiB per grid-step block
HORNER_MAX_DEGREE = 10      # monomial/Horner path is well-conditioned up to ~ this


def _round_up(a, b):
    return ((a + b - 1) // b) * b


def _legendre_monomial_matrix(degree):
    """M[k, j] = coefficient of x^j in Legendre P_k (built with exact Python floats)."""
    coefs = [[0.0] * (degree + 1) for _ in range(degree + 1)]
    coefs[0][0] = 1.0
    if degree >= 1:
        coefs[1][1] = 1.0
    for n in range(1, degree):
        # P_{n+1} = ((2n+1) x P_n - n P_{n-1}) / (n+1)
        a = (2.0 * n + 1.0) / (n + 1.0)
        b = float(n) / (n + 1.0)
        row = [0.0] * (degree + 1)
        for j in range(n + 1):
            if coefs[n][j] != 0.0:
                row[j + 1] += a * coefs[n][j]
        for j in range(n):
            if coefs[n - 1][j] != 0.0:
                row[j] -= b * coefs[n - 1][j]
        coefs[n + 1] = row
    return jnp.asarray(coefs, dtype=jnp.float32)


def _choose_tile_rows(R):
    if R <= CHUNK_R:
        return R                       # one small block == whole array
    # <= 4 MiB blocks; multiple of 2*CHUNK_R so the in-kernel chunk count is even
    # (clean unroll=2); aim for >= 4 grid steps for large R (pipelining + 2 TCs).
    return min(MAX_TILE_R, _round_up((R + 3) // 4, 2 * CHUNK_R))


def _poly_eval_kernel(coef_ref, x_ref, o_ref, *, degree, chunk_r, use_horner):
    """coef_ref: SMEM (degree+1,) f32 (monomial coeffs if use_horner, else Legendre
    weights); x_ref / o_ref: VMEM (tile_r, 128) f32 row-blocks."""
    tile_r = x_ref.shape[0]
    n_chunks = tile_r // chunk_r

    # Hoist all scalar SMEM reads out of the chunk loop.
    cs = [coef_ref[k] for k in range(degree + 1)]

    def eval_chunk(x):
        if degree == 0:
            return jnp.full(x.shape, cs[0], dtype=x.dtype)
        if use_horner:
            # sum_j c_j x^j via Horner: 2 VALU ops per degree, 2 live arrays.
            acc = cs[degree] * x + cs[degree - 1]
            for k in range(degree - 2, -1, -1):
                acc = acc * x + cs[k]
            return acc
        # High-degree fallback: Legendre 3-term recurrence, divide folded into
        # Python constants; no ones() materialization (P_0 enters via scalar splat).
        acc = cs[1] * x + cs[0]
        if degree >= 2:
            p_prev = x                          # P_1
            p_cur = 1.5 * (x * x) - 0.5         # P_2
            acc = acc + cs[2] * p_cur
            for ii in range(2, degree):
                a = (2.0 * ii + 1.0) / (ii + 1.0)
                b = float(ii) / (ii + 1.0)
                p_next = a * (x * p_cur) - b * p_prev
                acc = acc + cs[ii + 1] * p_next
                p_prev, p_cur = p_cur, p_next
        return acc

    def body(ci, carry):
        r0 = pl.multiple_of(ci * chunk_r, chunk_r)
        x = x_ref[pl.ds(r0, chunk_r), :]
        o_ref[pl.ds(r0, chunk_r), :] = eval_chunk(x)
        return carry

    if n_chunks == 1:
        o_ref[...] = eval_chunk(x_ref[...])
    elif n_chunks <= 8:
        lax.fori_loop(0, n_chunks, body, 0, unroll=True)
    else:
        lax.fori_loop(0, n_chunks, body, 0, unroll=2)   # n_chunks is even here


def univariate_poly_forward(x, y, weight, *, degree, poly_type="legendre"):
    """Pallas equivalent of UnivariatePoly.forward.

    x: (N,) f32; y: unused (mirrors the reference signature);
    weight: (1, degree+1) or (degree+1,) f32 = nn.Linear(degree+1, 1, bias=False).weight.
    Returns (N, 1) f32.
    """
    if poly_type != "legendre":
        raise NotImplementedError("only 'legendre' is implemented")
    del y  # unused by the reference forward (API parity only)

    xf = x.reshape(-1).astype(jnp.float32)
    n = xf.shape[0]
    n_pad = _round_up(max(n, LANES), LANES)
    if n_pad != n:
        # TODO(synk): non-128-aligned N still costs one pad + one slice HBM pass;
        # a fully in-place ragged tail would need a 1-D block (or manual-DMA) path.
        xf = jnp.pad(xf, (0, n_pad - n))
    R = n_pad // LANES
    x2 = xf.reshape(R, LANES)           # free reshape; consumed in place when aligned

    w = weight.reshape(-1).astype(jnp.float32)
    use_horner = degree <= HORNER_MAX_DEGREE
    if use_horner:
        # Fold the Linear weights into monomial coefficients once in the wrapper.
        coef = w @ _legendre_monomial_matrix(degree)     # (degree+1,)
    else:
        coef = w                                         # keep recurrence basis

    tile_r = _choose_tile_rows(R)
    chunk_r = min(CHUNK_R, tile_r)

    out2 = pl.pallas_call(
        partial(_poly_eval_kernel, degree=degree, chunk_r=chunk_r,
                use_horner=use_horner),
        out_shape=jax.ShapeDtypeStruct((R, LANES), jnp.float32),
        grid_spec=pltpu.PrefetchScalarGridSpec(
            num_scalar_prefetch=0,
            grid=(pl.cdiv(R, tile_r),),
            in_specs=[
                pl.BlockSpec(memory_space=pltpu.MemorySpace.SMEM),   # coefficients
                pl.BlockSpec((tile_r, LANES), lambda i: (i, 0)),     # x row-block
            ],
            out_specs=pl.BlockSpec((tile_r, LANES), lambda i: (i, 0)),
        ),
        compiler_params=pltpu.CompilerParams(
            dimension_semantics=("parallel",),
            vmem_limit_bytes=32 * 1024 * 1024,
        ),
    )(coef, x2)

    if n_pad == n:
        return out2.reshape(n, 1)       # free reshape, no extra HBM pass
    return out2.reshape(-1)[:n].reshape(n, 1)


def _reference_forward(x, weight, degree):
    """Plain-JAX reference (mirrors goroda/PyTorchPoly legendre + Linear)."""
    cols = [jnp.ones_like(x)]
    if degree > 0:
        cols.append(x)
        for ii in range(1, degree):
            cols.append(((2 * ii + 1) * x * cols[ii] - ii * cols[ii - 1]) / (ii + 1))
    vand = jnp.stack(cols, axis=-1)                  # (N, degree+1)
    return vand @ weight.reshape(-1, 1)              # (N, 1)


if __name__ == "__main__":
    key = jax.random.PRNGKey(0)

    # (N, degree) cases:
    #  - (4096, 4): lane-aligned zero-copy path, single block, Horner
    #  - (100000, 4): unaligned N (pad fallback) + multi-step cdiv grid with a
    #    masked partial last block, Horner
    #  - (4096, 12): high-degree Legendre-recurrence fallback path
    cases = [(4096, 4), (100000, 4), (4096, 12)]
    for n, degree in cases:
        key, kx, ky = jax.random.split(key, 3)
        x = jax.random.uniform(kx, (n,), jnp.float32, -1.0, 1.0)
        y = jax.random.uniform(ky, (n,), jnp.float32, -1.0, 1.0)

        # nn.Linear(degree+1, 1, bias=False).weight is (1, degree+1); init to ones.
        weight = jnp.ones((1, degree + 1), dtype=jnp.float32)
        # TODO(synk): linear_y / the `y` argument are never used in the reference
        # forward; omitted from the computation.

        out = univariate_poly_forward(x, y, weight, degree=degree,
                                      poly_type="legendre")
        out = jax.block_until_ready(out)

        ref = _reference_forward(x, weight, degree)
        assert out.shape == (n, 1), (out.shape, n)
        assert jnp.allclose(out, ref, atol=2e-5, rtol=2e-5), (n, degree)

    print("KERNEL_OK")
</pallas_src>

<mosaic_0001>
module attributes {stable_mosaic.version = 11 : i64} {
  func.func @_poly_eval_kernel(%arg0: i32, %arg1: memref<5xf32, #tpu.memory_space<smem>>, %arg2: memref<32x128xf32, #tpu.memory_space<vmem>>, %arg3: memref<32x128xf32, #tpu.memory_space<vmem>>) attributes {dimension_semantics = [#tpu.dimension_semantics<parallel>], iteration_bounds = array<i64: 1>, scalar_prefetch = 0 : i64, scratch_operands = 0 : i64, tpu.core_type = #tpu.core_type<tc>, window_params = [{transform_indices = @transform_0, window_bounds = array<i64: 5>}, {transform_indices = @transform_1, window_bounds = array<i64: 32, 128>}, {transform_indices = @transform_2, window_bounds = array<i64: 32, 128>}]} {
    %c0 = arith.constant 0 : index
    %0 = memref.load %arg1[%c0] : memref<5xf32, #tpu.memory_space<smem>>
    %c1 = arith.constant 1 : index
    %1 = memref.load %arg1[%c1] : memref<5xf32, #tpu.memory_space<smem>>
    %c2 = arith.constant 2 : index
    %2 = memref.load %arg1[%c2] : memref<5xf32, #tpu.memory_space<smem>>
    %c3 = arith.constant 3 : index
    %3 = memref.load %arg1[%c3] : memref<5xf32, #tpu.memory_space<smem>>
    %c4 = arith.constant 4 : index
    %4 = memref.load %arg1[%c4] : memref<5xf32, #tpu.memory_space<smem>>
    %c0_0 = arith.constant 0 : index
    %c0_1 = arith.constant 0 : index
    %5 = vector.load %arg2[%c0_0, %c0_1] : memref<32x128xf32, #tpu.memory_space<vmem>>, vector<32x128xf32>
    %6 = vector.broadcast %4 : f32 to vector<32x128xf32>
    %7 = arith.mulf %6, %5 : vector<32x128xf32>
    %8 = vector.broadcast %3 : f32 to vector<32x128xf32>
    %9 = arith.addf %7, %8 : vector<32x128xf32>
    %10 = arith.mulf %9, %5 : vector<32x128xf32>
    %11 = vector.broadcast %2 : f32 to vector<32x128xf32>
    %12 = arith.addf %10, %11 : vector<32x128xf32>
    %13 = arith.mulf %12, %5 : vector<32x128xf32>
    %14 = vector.broadcast %1 : f32 to vector<32x128xf32>
    %15 = arith.addf %13, %14 : vector<32x128xf32>
    %16 = arith.mulf %15, %5 : vector<32x128xf32>
    %17 = vector.broadcast %0 : f32 to vector<32x128xf32>
    %18 = arith.addf %16, %17 : vector<32x128xf32>
    %c0_2 = arith.constant 0 : index
    %c0_3 = arith.constant 0 : index
    %19 = vector.load %arg3[%c0_2, %c0_3] : memref<32x128xf32, #tpu.memory_space<vmem>>, vector<32x128xf32>
    tpu.vector_store %arg3[%c0_2, %c0_3], %18 {strides = array<i32>} : memref<32x128xf32, #tpu.memory_space<vmem>>, vector<32x128xf32>,
    return
  }
  func.func @transform_0(%arg0: i32) -> i32 {
    %c0_i32 = arith.constant 0 : i32
    %c0_i32_0 = arith.constant 0 : i32
    return %c0_i32 : i32
  }
  func.func @transform_1(%arg0: i32) -> (i32, i32) {
    %c0_i32 = arith.constant 0 : i32
    %c0_i32_0 = arith.constant 0 : i32
    return %arg0, %c0_i32 : i32, i32
  }
  func.func @transform_2(%arg0: i32) -> (i32, i32) {
    %c0_i32 = arith.constant 0 : i32
    %c0_i32_0 = arith.constant 0 : i32
    return %arg0, %c0_i32 : i32, i32
  }
}

</mosaic_0001>

<llo_original>
// kernel: tpu_custom_call.1
$region0: #{tpu_custom_call.1}
  #allocation0 [shape = 'u32[]', space=smem, size = 0x4, offset = 0x4, fixed_abs, tag = 'smem constant byte address 0x4 - core index']
  #allocation1 [shape = 'u32[144,128]{1,0:T(1,128)}', space=vmem, size = 0x12000, scoped, tag = 'internal scratch']
  %s0 = inlined_call_operand.hbm [shape: f32[5], index: 0, kind: input, shape index: {}]
  %s1 = inlined_call_operand.hbm [shape: f32[32,128], index: 1, kind: input, shape index: {}]
  %s2 = inlined_call_operand.hbm [shape: f32[32,128], index: 2, kind: output, shape index: {}]
  %s3 = sld [smem:[#allocation0]]
  $region26: #{tpu_custom_call.1} parent=0
    _
  %s5 = ssub.s32 1, %s3
  %s6 = scalar_select 0, %s5, %s3
  $region1: #{tpu_custom_call.1} parent=0
    #allocation2 [shape = 'u8[512]{0}', space=smem, size = 0x200, scoped, tag = 'input window, operand 0, single buffered']
    #allocation3 [shape = 's32[1]{0}', space=sflag, size = 0x4, scoped, tag = 'scoped memory for tpu_custom_call.1']
    #allocation4 [shape = 's32[1]{0}', space=sflag, size = 0x4, scoped, tag = 'scoped memory for tpu_custom_call.1']
    #allocation5 [shape = 's32[1]{0}', space=sflag, size = 0x4, scoped, tag = 'scoped memory for tpu_custom_call.1']
    #allocation6 [shape = 'u8[16384]{0}', space=vmem, size = 0x4000, scoped, tag = 'input window, operand 1, single buffered']
    #allocation7 [shape = 'u8[16384]{0}', space=vmem, size = 0x4000, scoped, tag = 'output window, operand 0, single buffered']
    %7 = vsyncpa [#allocation5], 0
    %8 = vsyncpa [#allocation3], 0
    %9 = vsyncpa [#allocation4], 0
    // Predicated region
    $region2: #{tpu_custom_call.1} parent=1 // pred_check
      _
    $region3: #{tpu_custom_call.1} parent=1 // pred_check_branch
      %11 = sbr.rel (0) target = $region5
    $region4: #{tpu_custom_call.1} parent=1 // pred_region
      %s13 = ssub.s32 16, 16
      %14 = vsyncadd [#allocation5], %s13
      %17 = dma.hbm_to_smem %s0, 16, [#allocation2], [#allocation5]
    $region5: #{tpu_custom_call.1} parent=1 // pred_fallthru
      _
    // Predicated region
    $region6: #{tpu_custom_call.1} parent=1 // pred_check
      _
    $region7: #{tpu_custom_call.1} parent=1 // pred_check_branch
      %19 = sbr.rel (0) target = $region9
    $region8: #{tpu_custom_call.1} parent=1 // pred_region
      %s21 = ssub.s32 512, 512
      %22 = vsyncadd [#allocation3], %s21
      %s23 = sshll.u32 [#allocation6], 4
      %s24 = int_to_ptr.vmem [resolvable:$true] %s23
      %29 = dma.hbm_to_vmem [thread:$0]  %s1, 512, %s24, [#allocation3], 128, 128, 8
    $region9: #{tpu_custom_call.1} parent=1 // pred_fallthru
      _
    // Predicated region
    $region10: #{tpu_custom_call.1} parent=1 // pred_check
      _
    $region11: #{tpu_custom_call.1} parent=1 // pred_check_branch
      %31 = sbr.rel (0) target = $region13
    $region12: #{tpu_custom_call.1} parent=1 // pred_region
      %32 = dma.done [#allocation5], 16
    $region13: #{tpu_custom_call.1} parent=1 // pred_fallthru
      _
    // Predicated region
    $region14: #{tpu_custom_call.1} parent=1 // pred_check
      _
    $region15: #{tpu_custom_call.1} parent=1 // pred_check_branch
      %34 = sbr.rel (0) target = $region17
    $region16: #{tpu_custom_call.1} parent=1 // pred_region
      %35 = dma.done [#allocation3], 512
    $region17: #{tpu_custom_call.1} parent=1 // pred_fallthru
      _
    %36 = sfence
    %s37 = sld [smem:[#allocation2]]
    %s38 = sld [smem:[#allocation2 + $0x1]]
    %s39 = sld [smem:[#allocation2 + $0x2]]
    %s40 = sld [smem:[#allocation2 + $0x3]]
    %s41 = sld [smem:[#allocation2 + $0x4]]
    %v42 = vld [vmem:[#allocation6] sm:$0xff]
    %v43 = vld [vmem:[#allocation6 + $0x8] sm:$0xff]
    %v44 = vld [vmem:[#allocation6 + $0x10] sm:$0xff]
    %v45 = vld [vmem:[#allocation6 + $0x18] sm:$0xff]
    %v46 = vstv %s41
    %v47 = vmul.f32 %v46, %v42
    %v48 = vmul.f32 %v46, %v43
    %v49 = vmul.f32 %v46, %v44
    %v50 = vmul.f32 %v46, %v45
    %v51 = vstv %s40
    %v52 = vadd.f32 %v47, %v51
    %v53 = vadd.f32 %v48, %v51
    %v54 = vadd.f32 %v49, %v51
    %v55 = vadd.f32 %v50, %v51
    %v56 = vmul.f32 %v52, %v42
    %v57 = vmul.f32 %v53, %v43
    %v58 = vmul.f32 %v54, %v44
    %v59 = vmul.f32 %v55, %v45
    %v60 = vstv %s39
    %v61 = vadd.f32 %v56, %v60
    %v62 = vadd.f32 %v57, %v60
    %v63 = vadd.f32 %v58, %v60
    %v64 = vadd.f32 %v59, %v60
    %v65 = vmul.f32 %v61, %v42
    %v66 = vmul.f32 %v62, %v43
    %v67 = vmul.f32 %v63, %v44
    %v68 = vmul.f32 %v64, %v45
    %v69 = vstv %s38
    %v70 = vadd.f32 %v65, %v69
    %v71 = vadd.f32 %v66, %v69
    %v72 = vadd.f32 %v67, %v69
    %v73 = vadd.f32 %v68, %v69
    %v74 = vmul.f32 %v70, %v42
    %v75 = vmul.f32 %v71, %v43
    %v76 = vmul.f32 %v72, %v44
    %v77 = vmul.f32 %v73, %v45
    %v78 = vstv %s37
    %v79 = vadd.f32 %v74, %v78
    %v80 = vadd.f32 %v75, %v78
    %v81 = vadd.f32 %v76, %v78
    %v82 = vadd.f32 %v77, %v78
    %83 = vst [vmem:[#allocation7] sm:$0xff] %v79
    %84 = vst [vmem:[#allocation7 + $0x8] sm:$0xff] %v80
    %85 = vst [vmem:[#allocation7 + $0x10] sm:$0xff] %v81
    %86 = vst [vmem:[#allocation7 + $0x18] sm:$0xff] %v82
    // Predicated region
    $region18: #{tpu_custom_call.1} parent=1 // pred_check
      _
    $region19: #{tpu_custom_call.1} parent=1 // pred_check_branch
      %88 = sbr.rel (0) target = $region21
    $region20: #{tpu_custom_call.1} parent=1 // pred_region
      %s90 = ssub.s32 512, 512
      %91 = vsyncadd [#allocation4], %s90
      %s92 = sshll.u32 [#allocation7], 4
      %s93 = int_to_ptr.vmem [resolvable:$true] %s92
      %98 = dma.vmem_to_hbm [thread:$0]  %s93, 512, %s2, [#allocation4], 128, 128, 8
    $region21: #{tpu_custom_call.1} parent=1 // pred_fallthru
      _
    // Predicated region
    $region22: #{tpu_custom_call.1} parent=1 // pred_check
      _
    $region23: #{tpu_custom_call.1} parent=1 // pred_check_branch
      %100 = sbr.rel (0) target = $region25
    $region24: #{tpu_custom_call.1} parent=1 // pred_region
      %101 = dma.done [#allocation4], 512
    $region25: #{tpu_custom_call.1} parent=1 // pred_fallthru
      _
    %102 = vsyncpa [#allocation3], 1
    %103 = vsyncpa [#allocation4], 1
    %104 = vsyncpa [#allocation5], 1

</llo_original>
